<compile_context>
chip_gen: v6e
topology: v6e:2x2x1
jax: 0.10.0
libtpu: 0.0.40
codegen_flags: <defaults>
</compile_context>

<pallas_src>
import functools
import math

import jax
import jax.numpy as jnp
from jax.experimental import pallas as pl
from jax.experimental.pallas import tpu as pltpu


def _ffn_block_kernel(x_ref, *refs, inv_d, pack, matmul_dtype):
    """One packed row-tile of LayerNorm -> Linear -> gelu -> Linear -> +residual."""
    if pack > 1:
        g_ref, gamma_ref, beta_ref, w1_ref, b1_ref, w2_ref, b2_ref, o_ref = refs
    else:
        gamma_ref, beta_ref, w1_ref, b1_ref, w2_ref, b2_ref, o_ref = refs

    x = x_ref[...].astype(jnp.float32)                 # (tm, P*D), lane-dense

    # --- LayerNorm over each D-sized lane group (eps matches torch 1e-5) ---
    if pack > 1:
        # Two independent MXU matmuls (no serialization through a centering
        # subtract); statistics math stays f32.
        s1 = jnp.dot(x, g_ref[...], preferred_element_type=jnp.float32)
        s2 = jnp.dot(x * x, g_ref[...], preferred_element_type=jnp.float32)
        mean = s1 * inv_d
        var = jnp.maximum(s2 * inv_d - mean * mean, 0.0)
    else:
        mean = jnp.mean(x, axis=-1, keepdims=True)
        var = jnp.mean((x - mean) ** 2, axis=-1, keepdims=True)
    inv_std = jax.lax.rsqrt(var + 1e-5)
    xn = (x - mean) * inv_std * gamma_ref[...] + beta_ref[...]

    # --- w_1 (block-diagonal packed): bf16/f32 MXU inputs, f32 accumulation ---
    h = jnp.dot(xn.astype(matmul_dtype), w1_ref[...],
                preferred_element_type=jnp.float32) + b1_ref[...]

    # --- exact erf GELU (matches the torch.erf reference) ---
    h = h * 0.5 * (1.0 + jax.lax.erf(h * (1.0 / math.sqrt(2.0))))

    # dropout: identity (eval mode)  # TODO(synk): training-mode dropout not implemented

    # --- w_2 (block-diagonal packed) ---
    y = jnp.dot(h.astype(matmul_dtype), w2_ref[...],
                preferred_element_type=jnp.float32) + b2_ref[...]

    # drop_path: identity (rate == 0 / eval); residual re-reads the input buffer
    # so the f32 tile is not kept live across the FFN body.
    o_ref[...] = (y + x_ref[...].astype(jnp.float32)).astype(o_ref.dtype)


def _round_up(a, b):
    return -(-a // b) * b


def _cdiv(a, b):
    return -(-a // b)


def _block_diag(w, p):
    """(din, dout) -> (p*din, p*dout) block-diagonal with p copies of w."""
    if p == 1:
        return w
    din, dout = w.shape
    eye = jnp.eye(p, dtype=w.dtype)
    return (eye[:, None, :, None] * w[None, :, None, :]).reshape(p * din, p * dout)


def pack_ffn_params(gamma, beta, w1, b1, w2, b2, *, matmul_dtype=jnp.bfloat16):
    """One-time parameter packing (hoist / cache this outside inference loops)."""
    D, F_ = w1.shape
    f32 = jnp.float32
    P = 128 // D if (D < 128 and 128 % D == 0) else 1
    PD, PF = P * D, P * F_
    params = dict(
        gammap=jnp.tile(gamma.astype(f32), P).reshape(1, PD),
        betap=jnp.tile(beta.astype(f32), P).reshape(1, PD),
        w1p=_block_diag(w1.astype(matmul_dtype), P),     # (PD, PF)
        b1p=jnp.tile(b1.astype(f32), P).reshape(1, PF),
        w2p=_block_diag(w2.astype(matmul_dtype), P),     # (PF, PD)
        b2p=jnp.tile(b2.astype(f32), P).reshape(1, PD),
    )
    if P > 1:
        gidx = jnp.arange(PD) // D
        params["G"] = (gidx[:, None] == gidx[None, :]).astype(f32)   # (PD, PD)
    return params, P


def feed_forward_block(x, gamma, beta, w1, b1, w2, b2, *,
                       tile_rows_packed=1024, matmul_dtype=jnp.bfloat16,
                       packed_params=None):
    """x: (B, S, D). gamma/beta: (D,). w1: (D, F), b1: (F,), w2: (F, D), b2: (D,)."""
    B, S, D = x.shape
    F_ = w1.shape[1]
    N = B * S

    if packed_params is None:
        packed_params = pack_ffn_params(gamma, beta, w1, b1, w2, b2,
                                        matmul_dtype=matmul_dtype)
    params, P = packed_params
    PD, PF = P * D, P * F_

    # Pack rows: (N, D) -> (N_p, P*D); at most a single pad (lane packing).
    x2 = x.reshape(N, D)
    N_p = _cdiv(N, P)
    if N_p * P != N:
        x2 = jnp.pad(x2, ((0, N_p * P - N), (0, 0)))
    xp = x2.reshape(N_p, PD)

    # Row-tile: large tiles amortize per-step overhead; no tile-alignment pad
    # (Pallas masks the ragged last block). Keep >= 2 grid steps when there is
    # enough work so the parallel axis splits across v7x's two TensorCores.
    if N_p <= 8:
        tm = N_p                                  # one full-array block
    else:
        tm = min(tile_rows_packed, _round_up(N_p, 8))
        if N_p > 16 and _cdiv(N_p, tm) < 2:
            tm = _round_up(_cdiv(N_p, 2), 8)
    grid = _cdiv(N_p, tm)

    itemsize_w = jnp.dtype(matmul_dtype).itemsize
    cost = pl.CostEstimate(
        flops=int(N_p * ((4 * PD * PD if P > 1 else 0) + 4 * PD * PF)),
        transcendentals=int(N_p * (PF + PD)),
        bytes_accessed=int(2 * N_p * PD * 4
                           + itemsize_w * 2 * PD * PF
                           + 4 * (PD * PD + 4 * PD + 2 * PF)),
    )

    row_spec = pl.BlockSpec((tm, PD), lambda i: (i, 0))

    def const_spec(shape):
        # Constant index_map -> single VMEM buffer is enough (no double buffer).
        return pl.BlockSpec(shape, lambda i: (0, 0), pipeline_mode=pl.Buffered(1))

    in_specs = [row_spec]
    args = [xp]
    if P > 1:
        in_specs.append(const_spec((PD, PD)))
        args.append(params["G"])
    in_specs += [const_spec((1, PD)), const_spec((1, PD)),
                 const_spec((PD, PF)), const_spec((1, PF)),
                 const_spec((PF, PD)), const_spec((1, PD))]
    args += [params["gammap"], params["betap"], params["w1p"], params["b1p"],
             params["w2p"], params["b2p"]]

    kernel = functools.partial(_ffn_block_kernel, inv_d=1.0 / D, pack=P,
                               matmul_dtype=matmul_dtype)

    out_p = pl.pallas_call(
        kernel,
        out_shape=jax.ShapeDtypeStruct((N_p, PD), x.dtype),
        grid_spec=pltpu.PrefetchScalarGridSpec(
            num_scalar_prefetch=0,
            grid=(grid,),
            in_specs=in_specs,
            out_specs=pl.BlockSpec((tm, PD), lambda i: (i, 0)),
        ),
        compiler_params=pltpu.CompilerParams(
            dimension_semantics=("parallel",)),
        cost_estimate=cost,
    )(*args)

    # Unpack lanes back to (B, S, D) and drop packing-pad rows.
    return out_p.reshape(N_p * P, D)[:N].reshape(B, S, D)


def _reference(x, gamma, beta, w1, b1, w2, b2):
    """Pure-JAX reference (matches the PyTorch module in eval mode)."""
    mean = jnp.mean(x, axis=-1, keepdims=True)
    var = jnp.mean((x - mean) ** 2, axis=-1, keepdims=True)
    xn = (x - mean) / jnp.sqrt(var + 1e-5) * gamma + beta
    h = xn @ w1 + b1
    h = h * 0.5 * (1.0 + jax.lax.erf(h / math.sqrt(2.0)))
    y = h @ w2 + b2
    return y + x


if __name__ == "__main__":
    # config: graph_d_model=32, graph_d_ff=64, dropout (eval -> identity),
    #         act_function='gelu', drop_path_rate=0.0 -> Identity
    B, S, D, Fdim = 2, 8, 32, 64

    key = jax.random.PRNGKey(0)
    k_x, k_w1, k_b1, k_w2, k_b2, k_g, k_b, k_x2 = jax.random.split(key, 8)

    x = jax.random.normal(k_x, (B, S, D), dtype=jnp.float32)

    # Deterministic parameter init (shapes per nn.Linear / nn.LayerNorm).
    # Stored as (in, out) for the kernel (PyTorch stores (out, in)).
    w1 = jax.random.normal(k_w1, (D, Fdim), dtype=jnp.float32) * (1.0 / math.sqrt(D))
    b1 = jax.random.normal(k_b1, (Fdim,), dtype=jnp.float32) * 0.01
    w2 = jax.random.normal(k_w2, (Fdim, D), dtype=jnp.float32) * (1.0 / math.sqrt(Fdim))
    b2 = jax.random.normal(k_b2, (D,), dtype=jnp.float32) * 0.01
    gamma = 1.0 + 0.05 * jax.random.normal(k_g, (D,), dtype=jnp.float32)
    beta = 0.05 * jax.random.normal(k_b, (D,), dtype=jnp.float32)

    ref = _reference(x, gamma, beta, w1, b1, w2, b2)

    # 1) Exact-semantics path (f32 MXU inputs) -- tight tolerance.
    out_f32 = jax.block_until_ready(
        feed_forward_block(x, gamma, beta, w1, b1, w2, b2,
                           matmul_dtype=jnp.float32))
    assert out_f32.shape == (B, S, D)
    assert jnp.allclose(out_f32, ref, atol=1e-4, rtol=1e-4), "f32 path mismatch"

    # 2) Default fast path (bf16 MXU inputs, f32 accumulation) -- looser tolerance.
    out_bf16 = jax.block_until_ready(
        feed_forward_block(x, gamma, beta, w1, b1, w2, b2))
    assert jnp.allclose(out_bf16, ref, atol=1e-1, rtol=1e-1), "bf16 path mismatch"

    # 3) Non-tile-aligned case: exercises the single packing pad, the ragged
    #    (masked) last grid block, a 2-step grid (v7x megacore), and pre-packed
    #    (cached) parameters.
    B2, S2 = 3, 70
    x_big = jax.random.normal(k_x2, (B2, S2, D), dtype=jnp.float32)
    ref_big = _reference(x_big, gamma, beta, w1, b1, w2, b2)
    packed_f32 = pack_ffn_params(gamma, beta, w1, b1, w2, b2,
                                 matmul_dtype=jnp.float32)
    out_big = jax.block_until_ready(
        feed_forward_block(x_big, gamma, beta, w1, b1, w2, b2,
                           matmul_dtype=jnp.float32, packed_params=packed_f32))
    assert out_big.shape == (B2, S2, D)
    assert jnp.allclose(out_big, ref_big, atol=1e-4, rtol=1e-4), "ragged-grid mismatch"

    print("KERNEL_OK")
</pallas_src>

<mosaic_0001>
module attributes {stable_mosaic.version = 11 : i64} {
  func.func @_ffn_block_kernel(%arg0: i32, %arg1: memref<4x128xf32, #tpu.memory_space<vmem>>, %arg2: memref<128x128xf32, #tpu.memory_space<vmem>>, %arg3: memref<1x128xf32, #tpu.memory_space<vmem>>, %arg4: memref<1x128xf32, #tpu.memory_space<vmem>>, %arg5: memref<128x256xf32, #tpu.memory_space<vmem>>, %arg6: memref<1x256xf32, #tpu.memory_space<vmem>>, %arg7: memref<256x128xf32, #tpu.memory_space<vmem>>, %arg8: memref<1x128xf32, #tpu.memory_space<vmem>>, %arg9: memref<4x128xf32, #tpu.memory_space<vmem>>) attributes {dimension_semantics = [#tpu.dimension_semantics<parallel>], iteration_bounds = array<i64: 1>, scalar_prefetch = 0 : i64, scratch_operands = 0 : i64, tpu.core_type = #tpu.core_type<tc>, window_params = [{transform_indices = @transform_0, window_bounds = array<i64: 4, 128>}, {pipeline_mode = #tpu.pipeline_mode<synchronous>, transform_indices = @transform_1, window_bounds = array<i64: 128, 128>}, {pipeline_mode = #tpu.pipeline_mode<synchronous>, transform_indices = @transform_2, window_bounds = array<i64: 1, 128>}, {pipeline_mode = #tpu.pipeline_mode<synchronous>, transform_indices = @transform_3, window_bounds = array<i64: 1, 128>}, {pipeline_mode = #tpu.pipeline_mode<synchronous>, transform_indices = @transform_4, window_bounds = array<i64: 128, 256>}, {pipeline_mode = #tpu.pipeline_mode<synchronous>, transform_indices = @transform_5, window_bounds = array<i64: 1, 256>}, {pipeline_mode = #tpu.pipeline_mode<synchronous>, transform_indices = @transform_6, window_bounds = array<i64: 256, 128>}, {pipeline_mode = #tpu.pipeline_mode<synchronous>, transform_indices = @transform_7, window_bounds = array<i64: 1, 128>}, {transform_indices = @transform_8, window_bounds = array<i64: 4, 128>}]} {
    %c0 = arith.constant 0 : index
    %c0_0 = arith.constant 0 : index
    %0 = vector.load %arg1[%c0, %c0_0] : memref<4x128xf32, #tpu.memory_space<vmem>>, vector<4x128xf32>
    %c0_1 = arith.constant 0 : index
    %c0_2 = arith.constant 0 : index
    %1 = vector.load %arg2[%c0_1, %c0_2] : memref<128x128xf32, #tpu.memory_space<vmem>>, vector<128x128xf32>
    %cst = arith.constant dense<0.000000e+00> : vector<4x128xf32>
    %2 = tpu.matmul %0, %1, %cst {dimension_numbers = #tpu.dot_dimension_numbers<[1], [0], [0], [1], [0, 0, 1, 1], [], []>} : vector<4x128xf32>, vector<128x128xf32>, vector<4x128xf32> -> vector<4x128xf32>
    %3 = arith.mulf %0, %0 : vector<4x128xf32>
    %c0_3 = arith.constant 0 : index
    %c0_4 = arith.constant 0 : index
    %4 = vector.load %arg2[%c0_3, %c0_4] : memref<128x128xf32, #tpu.memory_space<vmem>>, vector<128x128xf32>
    %cst_5 = arith.constant dense<0.000000e+00> : vector<4x128xf32>
    %5 = tpu.matmul %3, %4, %cst_5 {dimension_numbers = #tpu.dot_dimension_numbers<[1], [0], [0], [1], [0, 0, 1, 1], [], []>} : vector<4x128xf32>, vector<128x128xf32>, vector<4x128xf32> -> vector<4x128xf32>
    %cst_6 = arith.constant 3.125000e-02 : f32
    %6 = vector.broadcast %cst_6 : f32 to vector<4x128xf32>
    %7 = arith.mulf %2, %6 : vector<4x128xf32>
    %cst_7 = arith.constant 3.125000e-02 : f32
    %8 = vector.broadcast %cst_7 : f32 to vector<4x128xf32>
    %9 = arith.mulf %5, %8 : vector<4x128xf32>
    %10 = arith.mulf %7, %7 : vector<4x128xf32>
    %11 = arith.subf %9, %10 : vector<4x128xf32>
    %cst_8 = arith.constant 0.000000e+00 : f32
    %12 = vector.broadcast %cst_8 : f32 to vector<4x128xf32>
    %13 = arith.maximumf %11, %12 : vector<4x128xf32>
    %cst_9 = arith.constant 9.99999974E-6 : f32
    %14 = vector.broadcast %cst_9 : f32 to vector<4x128xf32>
    %15 = arith.addf %13, %14 : vector<4x128xf32>
    %16 = math.rsqrt %15 : vector<4x128xf32>
    %17 = arith.subf %0, %7 : vector<4x128xf32>
    %18 = arith.mulf %17, %16 : vector<4x128xf32>
    %c0_10 = arith.constant 0 : index
    %c0_11 = arith.constant 0 : index
    %19 = vector.load %arg3[%c0_10, %c0_11] : memref<1x128xf32, #tpu.memory_space<vmem>>, vector<1x128xf32>
    %20 = vector.broadcast %19 : vector<1x128xf32> to vector<4x128xf32>
    %21 = arith.mulf %18, %20 : vector<4x128xf32>
    %c0_12 = arith.constant 0 : index
    %c0_13 = arith.constant 0 : index
    %22 = vector.load %arg4[%c0_12, %c0_13] : memref<1x128xf32, #tpu.memory_space<vmem>>, vector<1x128xf32>
    %23 = vector.broadcast %22 : vector<1x128xf32> to vector<4x128xf32>
    %24 = arith.addf %21, %23 : vector<4x128xf32>
    %c0_14 = arith.constant 0 : index
    %c0_15 = arith.constant 0 : index
    %25 = vector.load %arg5[%c0_14, %c0_15] : memref<128x256xf32, #tpu.memory_space<vmem>>, vector<128x256xf32>
    %cst_16 = arith.constant dense<0.000000e+00> : vector<4x256xf32>
    %26 = tpu.matmul %24, %25, %cst_16 {dimension_numbers = #tpu.dot_dimension_numbers<[1], [0], [0], [1], [0, 0, 1, 1], [], []>} : vector<4x128xf32>, vector<128x256xf32>, vector<4x256xf32> -> vector<4x256xf32>
    %c0_17 = arith.constant 0 : index
    %c0_18 = arith.constant 0 : index
    %27 = vector.load %arg6[%c0_17, %c0_18] : memref<1x256xf32, #tpu.memory_space<vmem>>, vector<1x256xf32>
    %28 = vector.broadcast %27 : vector<1x256xf32> to vector<4x256xf32>
    %29 = arith.addf %26, %28 : vector<4x256xf32>
    %cst_19 = arith.constant 5.000000e-01 : f32
    %30 = vector.broadcast %cst_19 : f32 to vector<4x256xf32>
    %31 = arith.mulf %29, %30 : vector<4x256xf32>
    %cst_20 = arith.constant 0.707106769 : f32
    %32 = vector.broadcast %cst_20 : f32 to vector<4x256xf32>
    %33 = arith.mulf %29, %32 : vector<4x256xf32>
    %34 = math.erf %33 : vector<4x256xf32>
    %cst_21 = arith.constant 1.000000e+00 : f32
    %35 = vector.broadcast %cst_21 : f32 to vector<4x256xf32>
    %36 = arith.addf %35, %34 : vector<4x256xf32>
    %37 = arith.mulf %31, %36 : vector<4x256xf32>
    %c0_22 = arith.constant 0 : index
    %c0_23 = arith.constant 0 : index
    %38 = vector.load %arg7[%c0_22, %c0_23] : memref<256x128xf32, #tpu.memory_space<vmem>>, vector<256x128xf32>
    %cst_24 = arith.constant dense<0.000000e+00> : vector<4x128xf32>
    %39 = tpu.matmul %37, %38, %cst_24 {dimension_numbers = #tpu.dot_dimension_numbers<[1], [0], [0], [1], [0, 0, 1, 1], [], []>} : vector<4x256xf32>, vector<256x128xf32>, vector<4x128xf32> -> vector<4x128xf32>
    %c0_25 = arith.constant 0 : index
    %c0_26 = arith.constant 0 : index
    %40 = vector.load %arg8[%c0_25, %c0_26] : memref<1x128xf32, #tpu.memory_space<vmem>>, vector<1x128xf32>
    %41 = vector.broadcast %40 : vector<1x128xf32> to vector<4x128xf32>
    %42 = arith.addf %39, %41 : vector<4x128xf32>
    %c0_27 = arith.constant 0 : index
    %c0_28 = arith.constant 0 : index
    %43 = vector.load %arg1[%c0_27, %c0_28] : memref<4x128xf32, #tpu.memory_space<vmem>>, vector<4x128xf32>
    %44 = arith.addf %42, %43 : vector<4x128xf32>
    %c0_29 = arith.constant 0 : index
    %c0_30 = arith.constant 0 : index
    %45 = vector.load %arg9[%c0_29, %c0_30] : memref<4x128xf32, #tpu.memory_space<vmem>>, vector<4x128xf32>
    tpu.vector_store %arg9[%c0_29, %c0_30], %44 {strides = array<i32>} : memref<4x128xf32, #tpu.memory_space<vmem>>, vector<4x128xf32>,
    return
  }
  func.func @transform_0(%arg0: i32) -> (i32, i32) {
    %c0_i32 = arith.constant 0 : i32
    %c0_i32_0 = arith.constant 0 : i32
    return %arg0, %c0_i32 : i32, i32
  }
  func.func @transform_1(%arg0: i32) -> (i32, i32) {
    %c0_i32 = arith.constant 0 : i32
    %c0_i32_0 = arith.constant 0 : i32
    %c0_i32_1 = arith.constant 0 : i32
    return %c0_i32, %c0_i32_0 : i32, i32
  }
  func.func @transform_2(%arg0: i32) -> (i32, i32) {
    %c0_i32 = arith.constant 0 : i32
    %c0_i32_0 = arith.constant 0 : i32
    %c0_i32_1 = arith.constant 0 : i32
    return %c0_i32, %c0_i32_0 : i32, i32
  }
  func.func @transform_3(%arg0: i32) -> (i32, i32) {
    %c0_i32 = arith.constant 0 : i32
    %c0_i32_0 = arith.constant 0 : i32
    %c0_i32_1 = arith.constant 0 : i32
    return %c0_i32, %c0_i32_0 : i32, i32
  }
  func.func @transform_4(%arg0: i32) -> (i32, i32) {
    %c0_i32 = arith.constant 0 : i32
    %c0_i32_0 = arith.constant 0 : i32
    %c0_i32_1 = arith.constant 0 : i32
    return %c0_i32, %c0_i32_0 : i32, i32
  }
  func.func @transform_5(%arg0: i32) -> (i32, i32) {
    %c0_i32 = arith.constant 0 : i32
    %c0_i32_0 = arith.constant 0 : i32
    %c0_i32_1 = arith.constant 0 : i32
    return %c0_i32, %c0_i32_0 : i32, i32
  }
  func.func @transform_6(%arg0: i32) -> (i32, i32) {
    %c0_i32 = arith.constant 0 : i32
    %c0_i32_0 = arith.constant 0 : i32
    %c0_i32_1 = arith.constant 0 : i32
    return %c0_i32, %c0_i32_0 : i32, i32
  }
  func.func @transform_7(%arg0: i32) -> (i32, i32) {
    %c0_i32 = arith.constant 0 : i32
    %c0_i32_0 = arith.constant 0 : i32
    %c0_i32_1 = arith.constant 0 : i32
    return %c0_i32, %c0_i32_0 : i32, i32
  }
  func.func @transform_8(%arg0: i32) -> (i32, i32) {
    %c0_i32 = arith.constant 0 : i32
    %c0_i32_0 = arith.constant 0 : i32
    return %arg0, %c0_i32 : i32, i32
  }
}

</mosaic_0001>

<llo_original>
// kernel: tpu_custom_call.1
$region0: #{tpu_custom_call.1}
  #allocation0 [shape = 'u32[]', space=smem, size = 0x4, offset = 0x4, fixed_abs, tag = 'smem constant byte address 0x4 - core index']
  #allocation1 [shape = 'u32[144,128]{1,0:T(1,128)}', space=vmem, size = 0x12000, scoped, tag = 'internal scratch']
  %s0 = inlined_call_operand.hbm [shape: f32[4,128], index: 0, kind: input, shape index: {}]
  %s1 = inlined_call_operand.hbm [shape: f32[128,128], index: 1, kind: input, shape index: {}]
  %s2 = inlined_call_operand.vmem [shape: f32[1,128], index: 2, kind: input, shape index: {}]
  %s3 = inlined_call_operand.vmem [shape: f32[1,128], index: 3, kind: input, shape index: {}]
  %s4 = inlined_call_operand.hbm [shape: f32[128,256], index: 4, kind: input, shape index: {}]
  %s5 = inlined_call_operand.vmem [shape: f32[1,256], index: 5, kind: input, shape index: {}]
  %s6 = inlined_call_operand.hbm [shape: f32[256,128], index: 6, kind: input, shape index: {}]
  %s7 = inlined_call_operand.vmem [shape: f32[1,128], index: 7, kind: input, shape index: {}]
  %s8 = inlined_call_operand.hbm [shape: f32[4,128], index: 8, kind: output, shape index: {}]
  %s9 = sld [smem:[#allocation0]]
  $region58: #{tpu_custom_call.1} parent=0
    _
  %s11 = ssub.s32 1, %s9
  %s12 = scalar_select 0, %s11, %s9
  $region1: #{tpu_custom_call.1} parent=0
    #allocation2 [shape = 'u8[2048]{0}', space=vmem, size = 0x800, scoped, tag = 'input window, operand 0, single buffered']
    #allocation3 [shape = 's32[1]{0}', space=sflag, size = 0x4, scoped, tag = 'scoped memory for tpu_custom_call.1']
    #allocation4 [shape = 's32[1]{0}', space=sflag, size = 0x4, scoped, tag = 'scoped memory for tpu_custom_call.1']
    #allocation5 [shape = 'u8[65536]{0}', space=vmem, size = 0x10000, scoped, tag = 'input window, operand 1, single buffered']
    #allocation6 [shape = 's32[1]{0}', space=sflag, size = 0x4, scoped, tag = 'scoped memory for tpu_custom_call.1']
    #allocation7 [shape = 'u8[131072]{0}', space=vmem, size = 0x20000, scoped, tag = 'input window, operand 4, single buffered']
    #allocation8 [shape = 'u8[131072]{0}', space=vmem, size = 0x20000, scoped, tag = 'input window, operand 6, single buffered']
    #allocation9 [shape = 's32[1]{0}', space=sflag, size = 0x4, scoped, tag = 'scoped memory for tpu_custom_call.1']
    #allocation10 [shape = 'u8[2048]{0}', space=vmem, size = 0x800, scoped, tag = 'output window, operand 0, single buffered']
    %13 = vsyncpa [#allocation3], 0
    %14 = vsyncpa [#allocation6], 0
    %15 = vsyncpa [#allocation9], 0
    %16 = vsyncpa [#allocation4], 0
    // Predicated region
    $region2: #{tpu_custom_call.1} parent=1 // pred_check
      _
    $region3: #{tpu_custom_call.1} parent=1 // pred_check_branch
      %18 = sbr.rel (0) target = $region5
    $region4: #{tpu_custom_call.1} parent=1 // pred_region
      %s20 = ssub.s32 64, 64
      %21 = vsyncadd [#allocation3], %s20
      %s23 = sshll.u32 [#allocation2], 4
      %s24 = int_to_ptr.vmem [resolvable:$true] %s23
      %26 = dma.hbm_to_vmem [thread:$0]  %s0, 64, %s24, [#allocation3]
    $region5: #{tpu_custom_call.1} parent=1 // pred_fallthru
      _
    // Predicated region
    $region6: #{tpu_custom_call.1} parent=1 // pred_check
      _
    $region7: #{tpu_custom_call.1} parent=1 // pred_check_branch
      %28 = sbr.rel (0) target = $region9
    $region8: #{tpu_custom_call.1} parent=1 // pred_region
      %s30 = ssub.s32 2048, 2048
      %31 = vsyncadd [#allocation6], %s30
      %s32 = sshll.u32 [#allocation5], 4
      %s33 = int_to_ptr.vmem [resolvable:$true] %s32
      %38 = dma.hbm_to_vmem [thread:$0]  %s1, 2048, %s33, [#allocation6], 128, 128, 8
    $region9: #{tpu_custom_call.1} parent=1 // pred_fallthru
      _
    // Predicated region
    $region10: #{tpu_custom_call.1} parent=1 // pred_check
      _
    $region11: #{tpu_custom_call.1} parent=1 // pred_check_branch
      %40 = sbr.rel (0) target = $region13
    $region12: #{tpu_custom_call.1} parent=1 // pred_region
      _
    $region13: #{tpu_custom_call.1} parent=1 // pred_fallthru
      _
    // Predicated region
    $region14: #{tpu_custom_call.1} parent=1 // pred_check
      _
    $region15: #{tpu_custom_call.1} parent=1 // pred_check_branch
      %42 = sbr.rel (0) target = $region17
    $region16: #{tpu_custom_call.1} parent=1 // pred_region
      _
    $region17: #{tpu_custom_call.1} parent=1 // pred_fallthru
      _
    // Predicated region
    $region18: #{tpu_custom_call.1} parent=1 // pred_check
      _
    $region19: #{tpu_custom_call.1} parent=1 // pred_check_branch
      %44 = sbr.rel (0) target = $region21
    $region20: #{tpu_custom_call.1} parent=1 // pred_region
      %s46 = ssub.s32 4096, 4096
      %47 = vsyncadd [#allocation6], %s46
      %s48 = sshll.u32 [#allocation7], 4
      %s49 = int_to_ptr.vmem [resolvable:$true] %s48
      %54 = dma.hbm_to_vmem [thread:$0]  %s4, 4096, %s49, [#allocation6], 256, 256, 16
    $region21: #{tpu_custom_call.1} parent=1 // pred_fallthru
      _
    // Predicated region
    $region22: #{tpu_custom_call.1} parent=1 // pred_check
      _
    $region23: #{tpu_custom_call.1} parent=1 // pred_check_branch
      %56 = sbr.rel (0) target = $region25
    $region24: #{tpu_custom_call.1} parent=1 // pred_region
      _
    $region25: #{tpu_custom_call.1} parent=1 // pred_fallthru
      _
    // Predicated region
    $region26: #{tpu_custom_call.1} parent=1 // pred_check
      _
    $region27: #{tpu_custom_call.1} parent=1 // pred_check_branch
      %58 = sbr.rel (0) target = $region29
    $region28: #{tpu_custom_call.1} parent=1 // pred_region
      %s60 = ssub.s32 4096, 4096
      %61 = vsyncadd [#allocation9], %s60
      %s62 = sshll.u32 [#allocation8], 4
      %s63 = int_to_ptr.vmem [resolvable:$true] %s62
      %68 = dma.hbm_to_vmem [thread:$0]  %s6, 4096, %s63, [#allocation9], 128, 128, 8
    $region29: #{tpu_custom_call.1} parent=1 // pred_fallthru
      _
    // Predicated region
    $region30: #{tpu_custom_call.1} parent=1 // pred_check
      _
    $region31: #{tpu_custom_call.1} parent=1 // pred_check_branch
      %70 = sbr.rel (0) target = $region33
    $region32: #{tpu_custom_call.1} parent=1 // pred_region
      _
    $region33: #{tpu_custom_call.1} parent=1 // pred_fallthru
      _
    // Predicated region
    $region34: #{tpu_custom_call.1} parent=1 // pred_check
      _
    $region35: #{tpu_custom_call.1} parent=1 // pred_check_branch
      %72 = sbr.rel (0) target = $region37
    $region36: #{tpu_custom_call.1} parent=1 // pred_region
      %73 = dma.done [#allocation3], 64
    $region37: #{tpu_custom_call.1} parent=1 // pred_fallthru
      _
    // Predicated region
    $region38: #{tpu_custom_call.1} parent=1 // pred_check
      _
    $region39: #{tpu_custom_call.1} parent=1 // pred_check_branch
      %75 = sbr.rel (0) target = $region41
    $region40: #{tpu_custom_call.1} parent=1 // pred_region
      %76 = dma.done [#allocation6], 2048
    $region41: #{tpu_custom_call.1} parent=1 // pred_fallthru
      _
    // Predicated region
    $region42: #{tpu_custom_call.1} parent=1 // pred_check
      _
    $region43: #{tpu_custom_call.1} parent=1 // pred_check_branch
      %78 = sbr.rel (0) target = $region45
    $region44: #{tpu_custom_call.1} parent=1 // pred_region
      %79 = dma.done [#allocation6], 4096
    $region45: #{tpu_custom_call.1} parent=1 // pred_fallthru
      _
    // Predicated region
    $region46: #{tpu_custom_call.1} parent=1 // pred_check
      _
    $region47: #{tpu_custom_call.1} parent=1 // pred_check_branch
      %81 = sbr.rel (0) target = $region49
    $region48: #{tpu_custom_call.1} parent=1 // pred_region
      %82 = dma.done [#allocation9], 4096
    $region49: #{tpu_custom_call.1} parent=1 // pred_fallthru
      _
    %v83 = vld [vmem:[#allocation2] sm:$0xf]
    %v84 = vld [vmem:[#allocation5] sm:$0xff]
    %v85 = vld [vmem:[#allocation5 + $0x8] sm:$0xff]
    %v86 = vld [vmem:[#allocation5 + $0x10] sm:$0xff]
    %v87 = vld [vmem:[#allocation5 + $0x18] sm:$0xff]
    %v88 = vld [vmem:[#allocation5 + $0x20] sm:$0xff]
    %v89 = vld [vmem:[#allocation5 + $0x28] sm:$0xff]
    %v90 = vld [vmem:[#allocation5 + $0x30] sm:$0xff]
    %v91 = vld [vmem:[#allocation5 + $0x38] sm:$0xff]
    %v92 = vld [vmem:[#allocation5 + $0x40] sm:$0xff]
    %v93 = vld [vmem:[#allocation5 + $0x48] sm:$0xff]
    %v94 = vld [vmem:[#allocation5 + $0x50] sm:$0xff]
    %v95 = vld [vmem:[#allocation5 + $0x58] sm:$0xff]
    %v96 = vld [vmem:[#allocation5 + $0x60] sm:$0xff]
    %v97 = vld [vmem:[#allocation5 + $0x68] sm:$0xff]
    %v98 = vld [vmem:[#allocation5 + $0x70] sm:$0xff]
    %v99 = vld [vmem:[#allocation5 + $0x78] sm:$0xff]
    %100 = vmatprep.subr.mxu0 0.0
    %101 = vmatpush1.msra.mxu0 %v99
    %102 = vmatprep.subr.mxu0 0.0
    %103 = vmatpush1.msra.mxu0 %v98
    %104 = vmatprep.subr.mxu0 0.0
    %105 = vmatpush1.msra.mxu0 %v97
    %106 = vmatprep.subr.mxu0 0.0
    %107 = vmatpush1.msra.mxu0 %v96
    %108 = vmatprep.subr.mxu0 0.0
    %109 = vmatpush1.msra.mxu0 %v95
    %110 = vmatprep.subr.mxu0 0.0
    %111 = vmatpush1.msra.mxu0 %v94
    %112 = vmatprep.subr.mxu0 0.0
    %113 = vmatpush1.msra.mxu0 %v93
    %114 = vmatprep.subr.mxu0 0.0
    %115 = vmatpush1.msra.mxu0 %v92
    %116 = vmatprep.subr.mxu0 0.0
    %117 = vmatpush1.msra.mxu0 %v91
    %118 = vmatprep.subr.mxu0 0.0
    %119 = vmatpush1.msra.mxu0 %v90
    %120 = vmatprep.subr.mxu0 0.0
    %121 = vmatpush1.msra.mxu0 %v89
    %122 = vmatprep.subr.mxu0 0.0
    %123 = vmatpush1.msra.mxu0 %v88
    %124 = vmatprep.subr.mxu0 0.0
    %125 = vmatpush1.msra.mxu0 %v87
    %126 = vmatprep.subr.mxu0 0.0
    %127 = vmatpush1.msra.mxu0 %v86
    %128 = vmatprep.subr.mxu0 0.0
    %129 = vmatpush1.msra.mxu0 %v85
    %130 = vmatprep.subr.mxu0 0.0
    %131 = vmatpush1.msra.mxu0 %v84
    %132 = vmatprep.subr.mxu0 0.0
    %133 = vmatpush2.msra.mxu0 0.0
    %134 = vmatprep.subr.mxu0 0.0
    %135 = vmatpush2.msra.mxu0 0.0
    %136 = vmatprep.subr.mxu0 0.0
    %137 = vmatpush2.msra.mxu0 0.0
    %138 = vmatprep.subr.mxu0 0.0
    %139 = vmatpush2.msra.mxu0 0.0
    %140 = vmatprep.subr.mxu0 0.0
    %141 = vmatpush2.msra.mxu0 0.0
    %142 = vmatprep.subr.mxu0 0.0
    %143 = vmatpush2.msra.mxu0 0.0
    %144 = vmatprep.subr.mxu0 0.0
    %145 = vmatpush2.msra.mxu0 0.0
    %146 = vmatprep.subr.mxu0 0.0
    %147 = vmatpush2.msra.mxu0 0.0
    %148 = vmatprep.subr.mxu0 0.0
    %149 = vmatpush2.msra.mxu0 0.0
    %150 = vmatprep.subr.mxu0 0.0
    %151 = vmatpush2.msra.mxu0 0.0
    %152 = vmatprep.subr.mxu0 0.0
    %153 = vmatpush2.msra.mxu0 0.0
    %154 = vmatprep.subr.mxu0 0.0
    %155 = vmatpush2.msra.mxu0 0.0
    %156 = vmatprep.subr.mxu0 0.0
    %157 = vmatpush2.msra.mxu0 0.0
    %158 = vmatprep.subr.mxu0 0.0
    %159 = vmatpush2.msra.mxu0 0.0
    %160 = vmatprep.subr.mxu0 0.0
    %161 = vmatpush2.msra.mxu0 0.0
    %162 = vmatprep.subr.mxu0 0.0
    %163 = vmatpush2.msra.mxu0 0.0
    %164 = vmatprep.mubr.f32.mxu0 0.0
    %165 = vmatmul.mubr.f32.gmra.mxu0 %v83
    %v166 = vpop.f32.mrf.mxu0
    %v167 = vadd.f32 0.0, %v166
    %v168 = vpop.f32.mrf.mxu0
    %169 = vdwg.mxu0
    %v170 = vmul.f32 %v83, %v83
    %171 = vmatprep.subr.mxu0 0.0
    %172 = vmatpush1.msra.mxu0 %v99
    %173 = vmatprep.subr.mxu0 0.0
    %174 = vmatpush1.msra.mxu0 %v98
    %175 = vmatprep.subr.mxu0 0.0
    %176 = vmatpush1.msra.mxu0 %v97
    %177 = vmatprep.subr.mxu0 0.0
    %178 = vmatpush1.msra.mxu0 %v96
    %179 = vmatprep.subr.mxu0 0.0
    %180 = vmatpush1.msra.mxu0 %v95
    %181 = vmatprep.subr.mxu0 0.0
    %182 = vmatpush1.msra.mxu0 %v94
    %183 = vmatprep.subr.mxu0 0.0
    %184 = vmatpush1.msra.mxu0 %v93
    %185 = vmatprep.subr.mxu0 0.0
    %186 = vmatpush1.msra.mxu0 %v92
    %187 = vmatprep.subr.mxu0 0.0
    %188 = vmatpush1.msra.mxu0 %v91
    %189 = vmatprep.subr.mxu0 0.0
    %190 = vmatpush1.msra.mxu0 %v90
    %191 = vmatprep.subr.mxu0 0.0
    %192 = vmatpush1.msra.mxu0 %v89
    %193 = vmatprep.subr.mxu0 0.0
    %194 = vmatpush1.msra.mxu0 %v88
    %195 = vmatprep.subr.mxu0 0.0
    %196 = vmatpush1.msra.mxu0 %v87
    %197 = vmatprep.subr.mxu0 0.0
    %198 = vmatpush1.msra.mxu0 %v86
    %199 = vmatprep.subr.mxu0 0.0
    %200 = vmatpush1.msra.mxu0 %v85
    %201 = vmatprep.subr.mxu0 0.0
    %202 = vmatpush1.msra.mxu0 %v84
    %203 = vmatprep.subr.mxu0 0.0
    %204 = vmatpush2.msra.mxu0 0.0
    %205 = vmatprep.subr.mxu0 0.0
    %206 = vmatpush2.msra.mxu0 0.0
    %207 = vmatprep.subr.mxu0 0.0
    %208 = vmatpush2.msra.mxu0 0.0
    %209 = vmatprep.subr.mxu0 0.0
    %210 = vmatpush2.msra.mxu0 0.0
    %211 = vmatprep.subr.mxu0 0.0
    %212 = vmatpush2.msra.mxu0 0.0
    %213 = vmatprep.subr.mxu0 0.0
    %214 = vmatpush2.msra.mxu0 0.0
    %215 = vmatprep.subr.mxu0 0.0
    %216 = vmatpush2.msra.mxu0 0.0
    %217 = vmatprep.subr.mxu0 0.0
    %218 = vmatpush2.msra.mxu0 0.0
    %219 = vmatprep.subr.mxu0 0.0
    %220 = vmatpush2.msra.mxu0 0.0
    %221 = vmatprep.subr.mxu0 0.0
    %222 = vmatpush2.msra.mxu0 0.0
    %223 = vmatprep.subr.mxu0 0.0
    %224 = vmatpush2.msra.mxu0 0.0
    %225 = vmatprep.subr.mxu0 0.0
    %226 = vmatpush2.msra.mxu0 0.0
    %227 = vmatprep.subr.mxu0 0.0
    %228 = vmatpush2.msra.mxu0 0.0
    %229 = vmatprep.subr.mxu0 0.0
    %230 = vmatpush2.msra.mxu0 0.0
    %231 = vmatprep.subr.mxu0 0.0
    %232 = vmatpush2.msra.mxu0 0.0
    %233 = vmatprep.subr.mxu0 0.0
    %234 = vmatpush2.msra.mxu0 0.0
    %235 = vmatprep.mubr.f32.mxu0 0.0
    %236 = vmatmul.mubr.f32.gmra.mxu0 %v170
    %v237 = vpop.f32.mrf.mxu0
    %v238 = vadd.f32 0.0, %v237
    %v239 = vpop.f32.mrf.mxu0
    %240 = vdwg.mxu0
    %v241 = vmul.f32 %v167, 0.03125
    %v242 = vmul.f32 %v238, 0.03125
    %v243 = vmul.f32 %v241, %v241
    %v244 = vsub.f32 %v242, %v243
    %v245 = vmax.f32 %v244, 0.0
    %v246 = vadd.f32 %v245, 1e-05
    %v247 = vrsqrt.pop %v246
    %v248 = vsub.f32 %v83, %v241
    %v249 = vmul.f32 %v248, %v247
    %v250 = vld [vmem:[%s2] sm:$0x1]
    %v252 = vlaneseq
    %v253 = vshrl.u32 %v252, 7
    %v254 = vsub.s32 0, %v253
    %v255 = vrot.slane %v250, %v254
    %v257 = vmul.f32 %v249, %v255
    %v258 = vld [vmem:[%s3] sm:$0x1]
    %v260 = vlaneseq
    %v261 = vshrl.u32 %v260, 7
    %v262 = vsub.s32 0, %v261
    %v263 = vrot.slane %v258, %v262
    %v265 = vadd.f32 %v257, %v263
    %v266 = vld [vmem:[#allocation7] sm:$0xff]
    %v267 = vld [vmem:[#allocation7 + $0x8] sm:$0xff]
    %v268 = vld [vmem:[#allocation7 + $0x10] sm:$0xff]
    %v269 = vld [vmem:[#allocation7 + $0x18] sm:$0xff]
    %v270 = vld [vmem:[#allocation7 + $0x20] sm:$0xff]
    %v271 = vld [vmem:[#allocation7 + $0x28] sm:$0xff]
    %v272 = vld [vmem:[#allocation7 + $0x30] sm:$0xff]
    %v273 = vld [vmem:[#allocation7 + $0x38] sm:$0xff]
    %v274 = vld [vmem:[#allocation7 + $0x40] sm:$0xff]
    %v275 = vld [vmem:[#allocation7 + $0x48] sm:$0xff]
    %v276 = vld [vmem:[#allocation7 + $0x50] sm:$0xff]
    %v277 = vld [vmem:[#allocation7 + $0x58] sm:$0xff]
    %v278 = vld [vmem:[#allocation7 + $0x60] sm:$0xff]
    %v279 = vld [vmem:[#allocation7 + $0x68] sm:$0xff]
    %v280 = vld [vmem:[#allocation7 + $0x70] sm:$0xff]
    %v281 = vld [vmem:[#allocation7 + $0x78] sm:$0xff]
    %v282 = vld [vmem:[#allocation7 + $0x80] sm:$0xff]
    %v283 = vld [vmem:[#allocation7 + $0x88] sm:$0xff]
    %v284 = vld [vmem:[#allocation7 + $0x90] sm:$0xff]
    %v285 = vld [vmem:[#allocation7 + $0x98] sm:$0xff]
    %v286 = vld [vmem:[#allocation7 + $0xa0] sm:$0xff]
    %v287 = vld [vmem:[#allocation7 + $0xa8] sm:$0xff]
    %v288 = vld [vmem:[#allocation7 + $0xb0] sm:$0xff]
    %v289 = vld [vmem:[#allocation7 + $0xb8] sm:$0xff]
    %v290 = vld [vmem:[#allocation7 + $0xc0] sm:$0xff]
    %v291 = vld [vmem:[#allocation7 + $0xc8] sm:$0xff]
    %v292 = vld [vmem:[#allocation7 + $0xd0] sm:$0xff]
    %v293 = vld [vmem:[#allocation7 + $0xd8] sm:$0xff]
    %v294 = vld [vmem:[#allocation7 + $0xe0] sm:$0xff]
    %v295 = vld [vmem:[#allocation7 + $0xe8] sm:$0xff]
    %v296 = vld [vmem:[#allocation7 + $0xf0] sm:$0xff]
    %v297 = vld [vmem:[#allocation7 + $0xf8] sm:$0xff]
    %v298 = vld [vmem:[%s5] sm:$0x3]
    %v300 = vlaneseq
    %v301 = vshrl.u32 %v300, 7
    %v302 = vsub.s32 0, %v301
    %v303 = vrot.slane %v298, %v302
    %v304 = vlaneseq
    %v305 = vshrl.u32 %v304, 7
    %v306 = vsub.s32 1, %v305
    %v307 = vrot.slane %v298, %v306
    %310 = vmatprep.subr.mxu0 %v297
    %311 = vmatpush1.msra.mxu0 %v296
    %312 = vmatprep.subr.mxu0 %v295
    %313 = vmatpush1.msra.mxu0 %v294
    %314 = vmatprep.subr.mxu0 %v293
    %315 = vmatpush1.msra.mxu0 %v292
    %316 = vmatprep.subr.mxu0 %v291
    %317 = vmatpush1.msra.mxu0 %v290
    %318 = vmatprep.subr.mxu0 %v289
    %319 = vmatpush1.msra.mxu0 %v288
    %320 = vmatprep.subr.mxu0 %v287
    %321 = vmatpush1.msra.mxu0 %v286
    %322 = vmatprep.subr.mxu0 %v285
    %323 = vmatpush1.msra.mxu0 %v284
    %324 = vmatprep.subr.mxu0 %v283
    %325 = vmatpush1.msra.mxu0 %v282
    %326 = vmatprep.subr.mxu0 %v281
    %327 = vmatpush1.msra.mxu0 %v280
    %328 = vmatprep.subr.mxu0 %v279
    %329 = vmatpush1.msra.mxu0 %v278
    %330 = vmatprep.subr.mxu0 %v277
    %331 = vmatpush1.msra.mxu0 %v276
    %332 = vmatprep.subr.mxu0 %v275
    %333 = vmatpush1.msra.mxu0 %v274
    %334 = vmatprep.subr.mxu0 %v273
    %335 = vmatpush1.msra.mxu0 %v272
    %336 = vmatprep.subr.mxu0 %v271
    %337 = vmatpush1.msra.mxu0 %v270
    %338 = vmatprep.subr.mxu0 %v269
    %339 = vmatpush1.msra.mxu0 %v268
    %340 = vmatprep.subr.mxu0 %v267
    %341 = vmatpush1.msra.mxu0 %v266
    %342 = vmatprep.subr.mxu0 0.0
    %343 = vmatpush2.msra.mxu0 0.0
    %344 = vmatprep.subr.mxu0 0.0
    %345 = vmatpush2.msra.mxu0 0.0
    %346 = vmatprep.subr.mxu0 0.0
    %347 = vmatpush2.msra.mxu0 0.0
    %348 = vmatprep.subr.mxu0 0.0
    %349 = vmatpush2.msra.mxu0 0.0
    %350 = vmatprep.subr.mxu0 0.0
    %351 = vmatpush2.msra.mxu0 0.0
    %352 = vmatprep.subr.mxu0 0.0
    %353 = vmatpush2.msra.mxu0 0.0
    %354 = vmatprep.subr.mxu0 0.0
    %355 = vmatpush2.msra.mxu0 0.0
    %356 = vmatprep.subr.mxu0 0.0
    %357 = vmatpush2.msra.mxu0 0.0
    %358 = vmatprep.subr.mxu0 0.0
    %359 = vmatpush2.msra.mxu0 0.0
    %360 = vmatprep.subr.mxu0 0.0
    %361 = vmatpush2.msra.mxu0 0.0
    %362 = vmatprep.subr.mxu0 0.0
    %363 = vmatpush2.msra.mxu0 0.0
    %364 = vmatprep.subr.mxu0 0.0
    %365 = vmatpush2.msra.mxu0 0.0
    %366 = vmatprep.subr.mxu0 0.0
    %367 = vmatpush2.msra.mxu0 0.0
    %368 = vmatprep.subr.mxu0 0.0
    %369 = vmatpush2.msra.mxu0 0.0
    %370 = vmatprep.subr.mxu0 0.0
    %371 = vmatpush2.msra.mxu0 0.0
    %372 = vmatprep.subr.mxu0 0.0
    %373 = vmatpush2.msra.mxu0 0.0
    %374 = vmatprep.mubr.f32.mxu0 0.0
    %375 = vmatmul.mubr.f32.gmra.mxu0 %v265
    %v376 = vpop.f32.mrf.mxu0
    %v377 = vadd.f32 %v303, %v376
    %v378 = vpop.f32.mrf.mxu0
    %v379 = vadd.f32 %v307, %v378
    %380 = vdwg.mxu0
    %v381 = vmul.f32 %v377, 0.5
    %v382 = vmul.f32 %v379, 0.5
    %v383 = vmul.f32 %v377, 0.70710677
    %v384 = vmul.f32 %v379, 0.70710677
    %v385 = verf.f32.pop %v383
    %v386 = verf.f32.pop %v384
    %v387 = vadd.f32 %v385, 1.0
    %v388 = vadd.f32 %v386, 1.0
    %v389 = vmul.f32 %v381, %v387
    %v390 = vmul.f32 %v382, %v388
    %v391 = vld [vmem:[#allocation8] sm:$0xff]
    %v392 = vld [vmem:[#allocation8 + $0x8] sm:$0xff]
    %v393 = vld [vmem:[#allocation8 + $0x10] sm:$0xff]
    %v394 = vld [vmem:[#allocation8 + $0x18] sm:$0xff]
    %v395 = vld [vmem:[#allocation8 + $0x20] sm:$0xff]
    %v396 = vld [vmem:[#allocation8 + $0x28] sm:$0xff]
    %v397 = vld [vmem:[#allocation8 + $0x30] sm:$0xff]
    %v398 = vld [vmem:[#allocation8 + $0x38] sm:$0xff]
    %v399 = vld [vmem:[#allocation8 + $0x40] sm:$0xff]
    %v400 = vld [vmem:[#allocation8 + $0x48] sm:$0xff]
    %v401 = vld [vmem:[#allocation8 + $0x50] sm:$0xff]
    %v402 = vld [vmem:[#allocation8 + $0x58] sm:$0xff]
    %v403 = vld [vmem:[#allocation8 + $0x60] sm:$0xff]
    %v404 = vld [vmem:[#allocation8 + $0x68] sm:$0xff]
    %v405 = vld [vmem:[#allocation8 + $0x70] sm:$0xff]
    %v406 = vld [vmem:[#allocation8 + $0x78] sm:$0xff]
    %v407 = vld [vmem:[#allocation8 + $0x80] sm:$0xff]
    %v408 = vld [vmem:[#allocation8 + $0x88] sm:$0xff]
    %v409 = vld [vmem:[#allocation8 + $0x90] sm:$0xff]
    %v410 = vld [vmem:[#allocation8 + $0x98] sm:$0xff]
    %v411 = vld [vmem:[#allocation8 + $0xa0] sm:$0xff]
    %v412 = vld [vmem:[#allocation8 + $0xa8] sm:$0xff]
    %v413 = vld [vmem:[#allocation8 + $0xb0] sm:$0xff]
    %v414 = vld [vmem:[#allocation8 + $0xb8] sm:$0xff]
    %v415 = vld [vmem:[#allocation8 + $0xc0] sm:$0xff]
    %v416 = vld [vmem:[#allocation8 + $0xc8] sm:$0xff]
    %v417 = vld [vmem:[#allocation8 + $0xd0] sm:$0xff]
    %v418 = vld [vmem:[#allocation8 + $0xd8] sm:$0xff]
    %v419 = vld [vmem:[#allocation8 + $0xe0] sm:$0xff]
    %v420 = vld [vmem:[#allocation8 + $0xe8] sm:$0xff]
    %v421 = vld [vmem:[#allocation8 + $0xf0] sm:$0xff]
    %v422 = vld [vmem:[#allocation8 + $0xf8] sm:$0xff]
    %v423 = vld [vmem:[%s7] sm:$0x1]
    %v425 = vlaneseq
    %v426 = vshrl.u32 %v425, 7
    %v427 = vsub.s32 0, %v426
    %v428 = vrot.slane %v423, %v427
    %430 = vmatprep.subr.mxu0 0.0
    %431 = vmatpush1.msra.mxu0 %v406
    %432 = vmatprep.subr.mxu0 0.0
    %433 = vmatpush1.msra.mxu0 %v405
    %434 = vmatprep.subr.mxu0 0.0
    %435 = vmatpush1.msra.mxu0 %v404
    %436 = vmatprep.subr.mxu0 0.0
    %437 = vmatpush1.msra.mxu0 %v403
    %438 = vmatprep.subr.mxu0 0.0
    %439 = vmatpush1.msra.mxu0 %v402
    %440 = vmatprep.subr.mxu0 0.0
    %441 = vmatpush1.msra.mxu0 %v401
    %442 = vmatprep.subr.mxu0 0.0
    %443 = vmatpush1.msra.mxu0 %v400
    %444 = vmatprep.subr.mxu0 0.0
    %445 = vmatpush1.msra.mxu0 %v399
    %446 = vmatprep.subr.mxu0 0.0
    %447 = vmatpush1.msra.mxu0 %v398
    %448 = vmatprep.subr.mxu0 0.0
    %449 = vmatpush1.msra.mxu0 %v397
    %450 = vmatprep.subr.mxu0 0.0
    %451 = vmatpush1.msra.mxu0 %v396
    %452 = vmatprep.subr.mxu0 0.0
    %453 = vmatpush1.msra.mxu0 %v395
    %454 = vmatprep.subr.mxu0 0.0
    %455 = vmatpush1.msra.mxu0 %v394
    %456 = vmatprep.subr.mxu0 0.0
    %457 = vmatpush1.msra.mxu0 %v393
    %458 = vmatprep.subr.mxu0 0.0
    %459 = vmatpush1.msra.mxu0 %v392
    %460 = vmatprep.subr.mxu0 0.0
    %461 = vmatpush1.msra.mxu0 %v391
    %462 = vmatprep.subr.mxu0 0.0
    %463 = vmatpush2.msra.mxu0 %v422
    %464 = vmatprep.subr.mxu0 0.0
    %465 = vmatpush2.msra.mxu0 %v421
    %466 = vmatprep.subr.mxu0 0.0
    %467 = vmatpush2.msra.mxu0 %v420
    %468 = vmatprep.subr.mxu0 0.0
    %469 = vmatpush2.msra.mxu0 %v419
    %470 = vmatprep.subr.mxu0 0.0
    %471 = vmatpush2.msra.mxu0 %v418
    %472 = vmatprep.subr.mxu0 0.0
    %473 = vmatpush2.msra.mxu0 %v417
    %474 = vmatprep.subr.mxu0 0.0
    %475 = vmatpush2.msra.mxu0 %v416
    %476 = vmatprep.subr.mxu0 0.0
    %477 = vmatpush2.msra.mxu0 %v415
    %478 = vmatprep.subr.mxu0 0.0
    %479 = vmatpush2.msra.mxu0 %v414
    %480 = vmatprep.subr.mxu0 0.0
    %481 = vmatpush2.msra.mxu0 %v413
    %482 = vmatprep.subr.mxu0 0.0
    %483 = vmatpush2.msra.mxu0 %v412
    %484 = vmatprep.subr.mxu0 0.0
    %485 = vmatpush2.msra.mxu0 %v411
    %486 = vmatprep.subr.mxu0 0.0
    %487 = vmatpush2.msra.mxu0 %v410
    %488 = vmatprep.subr.mxu0 0.0
    %489 = vmatpush2.msra.mxu0 %v409
    %490 = vmatprep.subr.mxu0 0.0
    %491 = vmatpush2.msra.mxu0 %v408
    %492 = vmatprep.subr.mxu0 0.0
    %493 = vmatpush2.msra.mxu0 %v407
    %494 = vmatprep.mubr.f32.mxu0 %v390
    %495 = vmatmul.mubr.f32.gmra.mxu0 %v389
    %v496 = vpop.f32.mrf.mxu0
    %v497 = vadd.f32 %v428, %v496
    %v498 = vpop.f32.mrf.mxu0
    %499 = vdwg.mxu0
    %v500 = vadd.f32 %v497, %v83
    %501 = vst [vmem:[#allocation10] sm:$0xf] %v500
    // Predicated region
    $region50: #{tpu_custom_call.1} parent=1 // pred_check
      _
    $region51: #{tpu_custom_call.1} parent=1 // pred_check_branch
      %503 = sbr.rel (0) target = $region53
    $region52: #{tpu_custom_call.1} parent=1 // pred_region
      %s505 = ssub.s32 64, 64
      %506 = vsyncadd [#allocation4], %s505
      %s508 = sshll.u32 [#allocation10], 4
      %s509 = int_to_ptr.vmem [resolvable:$true] %s508
      %511 = dma.vmem_to_hbm [thread:$0]  %s509, 64, %s8, [#allocation4]
    $region53: #{tpu_custom_call.1} parent=1 // pred_fallthru
      _
    // Predicated region
    $region54: #{tpu_custom_call.1} parent=1 // pred_check
      _
    $region55: #{tpu_custom_call.1} parent=1 // pred_check_branch
      %513 = sbr.rel (0) target = $region57
    $region56: #{tpu_custom_call.1} parent=1 // pred_region
      %514 = dma.done [#allocation4], 64
    $region57: #{tpu_custom_call.1} parent=1 // pred_fallthru
      _
    %515 = vsyncpa [#allocation3], 1
    %516 = vsyncpa [#allocation6], 1
    %517 = vsyncpa [#allocation9], 1
    %518 = vsyncpa [#allocation4], 1

</llo_original>
